<compile_context>
chip_gen: v7x
topology: tpu7x:2x2x1
jax: 0.10.0
libtpu: 0.0.40
codegen_flags: <defaults>
</compile_context>

<pallas_src>
import math
import numpy as np

import jax
import jax.numpy as jnp
from jax.experimental import pallas as pl
from jax.experimental.pallas import tpu as pltpu


def _round_up(x, m):
    return (x + m - 1) // m * m


# ---------------------------------------------------------------------------
# Kernel
# ---------------------------------------------------------------------------
def _make_attention_kernel(use_mask, s_chunk):
    """Per-batch-tile attention: score -> (multiplicative-mask) softmax -> mix.

    Each batch row is a matvec / vec^T-mat, so the contractions are done as
    VPU multiplies + XLU reductions (no per-batch MXU matvecs), chunked over S
    so the f32 temporaries stay bounded regardless of the enc tile size.
    """

    def kernel(*refs):
        if use_mask:
            proj_ref, enc_ref, mask_ref, out_ref, score_ref = refs
        else:
            proj_ref, enc_ref, out_ref, score_ref = refs

        bt, S, H = enc_ref.shape
        proj = proj_ref[...].astype(jnp.float32)                   # (bt, H)

        # score[b, s] = sum_h enc[b, s, h] * proj[b, h]   (lane reduce over H)
        for s0 in range(0, S, s_chunk):
            sc = min(s_chunk, S - s0)
            e = enc_ref[:, pl.ds(s0, sc), :].astype(jnp.float32)   # (bt, sc, H)
            score_ref[:, pl.ds(s0, sc)] = jnp.sum(e * proj[:, None, :], axis=-1)

        score = score_ref[...]                                     # (bt, S) f32
        if use_mask:
            maskv = mask_ref[...].astype(jnp.float32)
            score = score * maskv

        # Softmax over S.  Multiplicative masking (score*mask, softmax, att*mask)
        # matches the PyTorch module: masked slots still contribute exp(0 - max)
        # to the denominator.  Max subtraction is shift-invariant (== f.softmax).
        m = jnp.max(score, axis=-1, keepdims=True)
        p = jnp.exp(score - m)
        att = p / jnp.sum(p, axis=-1, keepdims=True)               # exact divide
        if use_mask:
            att = att * maskv

        # out[b, h] = sum_s att[b, s] * enc[b, s, h]      (sublane reduce over S)
        acc = jnp.zeros((bt, H), jnp.float32)
        for s0 in range(0, S, s_chunk):
            sc = min(s_chunk, S - s0)
            e = enc_ref[:, pl.ds(s0, sc), :].astype(jnp.float32)   # (bt, sc, H)
            acc = acc + jnp.sum(att[:, s0:s0 + sc, None] * e, axis=1)
        out_ref[...] = acc.astype(out_ref.dtype)

    return kernel


# ---------------------------------------------------------------------------
# Tiling heuristics
# ---------------------------------------------------------------------------
def _generation_budgets():
    """(enc_tile_budget_bytes, vmem_limit_bytes, ensure_two_blocks) per TPU gen.

    v5e: ~820 GB/s HBM, 128 MiB VMEM -> tile size is not the lever, keep modest.
    v6e: ~1.4 TB/s,    128 MiB VMEM -> larger tiles amortize ~0.35us/grid-step.
    v7x: ~3.2 TB/s,     64 MiB VMEM/TC, 2 TCs -> mid-size tiles and guarantee a
         >=2-block grid so the "parallel" batch axis shards across both cores.
    """
    kind = ""
    try:
        kind = jax.devices()[0].device_kind.lower()
    except Exception:
        pass
    if "v6" in kind:
        return 12 * 2**20, 64 * 2**20, False
    if "v5" in kind:
        return 6 * 2**20, 40 * 2**20, False
    if "v7" in kind or "tpu7" in kind:
        return 8 * 2**20, 44 * 2**20, True
    return 4 * 2**20, 32 * 2**20, True          # unknown generation: conservative


def _choose_b_tile(B, S, H, itemsize, enc_tile_budget, ensure_two_blocks):
    """Largest batch tile whose enc slab fits the per-generation budget (the
    BlockSpec pipeline double-buffers it), sublane-aligned to 16."""
    row_bytes = max(1, S * H * itemsize)
    bt = max(1, enc_tile_budget // row_bytes)
    if ensure_two_blocks and B > 16:
        bt = min(bt, _round_up(-(-B // 2), 16))  # >= 2 grid blocks for 2 TCs
    if bt >= B:
        return B
    return max(16, (bt // 16) * 16)


def _choose_s_chunk(S, b_tile, H, temp_budget=4 * 1024 * 1024):
    """S-chunk for the in-kernel VPU passes: bounds the (b_tile, s_chunk, H)
    f32 temporary to ~temp_budget; multiples of 128 keep score-scratch stores
    lane-aligned."""
    if S <= 128:
        return S
    sc = temp_budget // max(1, b_tile * H * 4)
    sc = max(128, (sc // 128) * 128)
    return min(S, sc)


# ---------------------------------------------------------------------------
# Wrapper
# ---------------------------------------------------------------------------
def attention_forward(hidden, weight, encoder_outputs, mask=None, *,
                      stream_dtype=jnp.bfloat16, b_tile=None):
    """Forward pass of Attention(method='general').

    hidden:          (B, H)   decoder state
    weight:          (H, H)   nn.Linear weight (y = x @ W^T, bias-free)
    encoder_outputs: (B, S, H)
    mask:            (B, S) or None (0/1 mask, any dtype)
    Returns (B, H) in hidden.dtype.

    stream_dtype: dtype the dominant encoder_outputs stream (and proj) is fed
      to the kernel in.  Default bfloat16 halves HBM traffic (the kernel is
      HBM-bandwidth-bound); accumulation stays f32 in-kernel.  Pass
      jnp.float32 / None for bit-exact f32 streaming.  NOTE: the bandwidth win
      requires the cast to fuse into the producer of encoder_outputs (call
      under jit with the rest of the model, or pass bf16 activations directly).
    """
    B, S, H = encoder_outputs.shape
    out_dtype = hidden.dtype

    # Projection GEMM hoisted to XLA (a dense GEMM it already does well).
    proj = jnp.dot(hidden, weight.T)                               # (B, H)

    enc = encoder_outputs
    if stream_dtype is not None:
        sdt = np.dtype(stream_dtype)
        if enc.dtype != sdt:
            enc = enc.astype(sdt)
        if proj.dtype != sdt:
            proj = proj.astype(sdt)

    use_mask = mask is not None
    if use_mask and (mask.dtype == jnp.bool_ or jnp.issubdtype(mask.dtype, jnp.integer)):
        # 2-byte stream, exact for 0/1 masks; converted to f32 in-kernel.
        mask = mask.astype(jnp.bfloat16)

    # No jnp.pad of enc anywhere: every BlockSpec keeps its last two dims at
    # full array extent (legal even when H % 128 != 0 / S % 8 != 0), and a
    # non-dividing batch tile is handled by Pallas' partial edge block
    # (out-of-bounds rows are never written back).
    enc_budget, vmem_limit, two_blocks = _generation_budgets()
    if b_tile is None:
        b_tile = _choose_b_tile(B, S, H, enc.dtype.itemsize, enc_budget, two_blocks)
    b_tile = int(b_tile)
    if b_tile >= B:
        b_tile = B
    else:
        b_tile = max(16, (b_tile // 16) * 16)    # sublane-aligned (f32 & bf16 blocks)
        if b_tile >= B:
            b_tile = B
    nb = pl.cdiv(B, b_tile)
    s_chunk = _choose_s_chunk(S, b_tile, H)

    in_specs = [
        pl.BlockSpec((b_tile, H), lambda i: (i, 0)),               # proj (tiny)
        pl.BlockSpec((b_tile, S, H), lambda i: (i, 0, 0)),         # enc (dominant)
    ]
    args = [proj, enc]
    if use_mask:
        in_specs.append(pl.BlockSpec((b_tile, S), lambda i: (i, 0)))
        args.append(mask)

    out = pl.pallas_call(
        _make_attention_kernel(use_mask, s_chunk),
        out_shape=jax.ShapeDtypeStruct((B, H), out_dtype),
        grid=(nb,),
        in_specs=in_specs,
        out_specs=pl.BlockSpec((b_tile, H), lambda i: (i, 0)),
        scratch_shapes=[pltpu.VMEM((b_tile, S), jnp.float32)],     # score accumulator
        compiler_params=pltpu.CompilerParams(
            dimension_semantics=("parallel",),
            vmem_limit_bytes=int(vmem_limit)),
    )(*args)

    return out


# ---------------------------------------------------------------------------
# Reference + tests
# ---------------------------------------------------------------------------
def _xavier_uniform(key, shape):
    fan_in, fan_out = shape[1], shape[0]
    limit = math.sqrt(6.0 / (fan_in + fan_out))
    return jax.random.uniform(key, shape, jnp.float32, -limit, limit)


def _reference(hidden, weight, enc, mask=None, stream_dtype=None):
    """Pure-JAX reference mirroring the PyTorch module; optionally applies the
    same bf16 rounding as the streamed operands for apples-to-apples checks."""
    proj = jnp.dot(hidden, weight.T)
    if stream_dtype is not None and np.dtype(stream_dtype) != np.dtype(jnp.float32):
        enc = enc.astype(stream_dtype).astype(jnp.float32)
        proj = proj.astype(stream_dtype).astype(jnp.float32)
    score = jnp.sum(enc * proj[:, None, :], axis=-1)
    maskf = None
    if mask is not None:
        maskf = mask.astype(score.dtype)
        score = score * maskf
    m = jnp.max(score, axis=-1, keepdims=True)
    p = jnp.exp(score - m)
    att = p / jnp.sum(p, axis=-1, keepdims=True)
    if mask is not None:
        att = att * maskf
    return jnp.sum(att[:, :, None] * enc, axis=1)


if __name__ == "__main__":
    key = jax.random.PRNGKey(0)
    k_w, k_h, k_e, k2 = jax.random.split(key, 4)

    # --- test 1: small shapes, no mask, exact f32 streaming ------------------
    B, S, H = 2, 8, 32
    weight = _xavier_uniform(k_w, (H, H))          # nn.Linear weight, xavier init
    hidden = jax.random.normal(k_h, (B, H), jnp.float32)
    enc = jax.random.normal(k_e, (B, S, H), jnp.float32)

    out = jax.block_until_ready(
        attention_forward(hidden, weight, enc, mask=None, stream_dtype=jnp.float32))
    ref = _reference(hidden, weight, enc, mask=None)
    assert out.shape == (B, H)
    assert jnp.allclose(out, ref, atol=2e-3, rtol=2e-3), \
        float(jnp.max(jnp.abs(out - ref)))

    # --- test 2: masked, bf16 streaming, batch tiling with a partial tail ----
    B2, S2, H2 = 20, 16, 48
    k_w2, k_h2, k_e2 = jax.random.split(k2, 3)
    weight2 = _xavier_uniform(k_w2, (H2, H2))
    hidden2 = jax.random.normal(k_h2, (B2, H2), jnp.float32)
    enc2 = jax.random.normal(k_e2, (B2, S2, H2), jnp.float32)
    lens = (jnp.arange(B2) % S2) + 1
    mask2 = jnp.arange(S2)[None, :] < lens[:, None]     # bool mask, streamed narrow

    out2 = jax.block_until_ready(
        attention_forward(hidden2, weight2, enc2, mask=mask2, b_tile=16))
    ref2 = _reference(hidden2, weight2, enc2, mask=mask2, stream_dtype=jnp.bfloat16)
    assert out2.shape == (B2, H2)
    assert jnp.allclose(out2, ref2, atol=2e-3, rtol=2e-3), \
        float(jnp.max(jnp.abs(out2 - ref2)))

    print("KERNEL_OK")
</pallas_src>

<mosaic_0001>
module attributes {stable_mosaic.version = 11 : i64} {
  func.func @kernel(%arg0: i32, %arg1: memref<2x32xf32, #tpu.memory_space<vmem>>, %arg2: memref<2x8x32xf32, #tpu.memory_space<vmem>>, %arg3: memref<2x32xf32, #tpu.memory_space<vmem>>, %arg4: memref<2x8xf32, #tpu.memory_space<vmem>>) attributes {dimension_semantics = [#tpu.dimension_semantics<parallel>], iteration_bounds = array<i64: 1>, scalar_prefetch = 0 : i64, scratch_operands = 1 : i64, tpu.core_type = #tpu.core_type<tc>, window_params = [{transform_indices = @transform_0, window_bounds = array<i64: 2, 32>}, {transform_indices = @transform_1, window_bounds = array<i64: 2, 8, 32>}, {transform_indices = @transform_2, window_bounds = array<i64: 2, 32>}]} {
    %c0 = arith.constant 0 : index
    %c0_0 = arith.constant 0 : index
    %0 = vector.load %arg1[%c0, %c0_0] : memref<2x32xf32, #tpu.memory_space<vmem>>, vector<2x32xf32>
    %c0_1 = arith.constant 0 : index
    %c0_2 = arith.constant 0 : index
    %c0_3 = arith.constant 0 : index
    %1 = vector.load %arg2[%c0_1, %c0_2, %c0_3] : memref<2x8x32xf32, #tpu.memory_space<vmem>>, vector<2x8x32xf32>
    %2 = vector.shape_cast %0 : vector<2x32xf32> to vector<2x1x32xf32>
    %3 = vector.broadcast %2 : vector<2x1x32xf32> to vector<2x8x32xf32>
    %4 = arith.mulf %1, %3 : vector<2x8x32xf32>
    %cst = arith.constant dense<0.000000e+00> : vector<2x8xf32>
    %5 = vector.multi_reduction <add>, %4, %cst [2] : vector<2x8x32xf32> to vector<2x8xf32>
    %c0_4 = arith.constant 0 : index
    %c0_5 = arith.constant 0 : index
    %6 = vector.load %arg4[%c0_4, %c0_5] : memref<2x8xf32, #tpu.memory_space<vmem>>, vector<2x8xf32>
    tpu.vector_store %arg4[%c0_4, %c0_5], %5 {strides = array<i32>} : memref<2x8xf32, #tpu.memory_space<vmem>>, vector<2x8xf32>,
    %c0_6 = arith.constant 0 : index
    %c0_7 = arith.constant 0 : index
    %7 = vector.load %arg4[%c0_6, %c0_7] : memref<2x8xf32, #tpu.memory_space<vmem>>, vector<2x8xf32>
    %cst_8 = arith.constant dense<0xFF800000> : vector<2xf32>
    %8 = vector.multi_reduction <maximumf>, %7, %cst_8 [1] : vector<2x8xf32> to vector<2xf32>
    %9 = vector.shape_cast %8 : vector<2xf32> to vector<2x1xf32>
    %10 = vector.broadcast %9 : vector<2x1xf32> to vector<2x8xf32>
    %11 = arith.subf %7, %10 : vector<2x8xf32>
    %12 = math.exp %11 : vector<2x8xf32>
    %cst_9 = arith.constant dense<0.000000e+00> : vector<2xf32>
    %13 = vector.multi_reduction <add>, %12, %cst_9 [1] : vector<2x8xf32> to vector<2xf32>
    %14 = vector.shape_cast %13 : vector<2xf32> to vector<2x1xf32>
    %15 = vector.broadcast %14 : vector<2x1xf32> to vector<2x8xf32>
    %16 = arith.divf %12, %15 : vector<2x8xf32>
    %cst_10 = arith.constant 0.000000e+00 : f32
    %17 = vector.broadcast %cst_10 : f32 to vector<2x32xf32>
    %c0_11 = arith.constant 0 : index
    %c0_12 = arith.constant 0 : index
    %c0_13 = arith.constant 0 : index
    %18 = vector.load %arg2[%c0_11, %c0_12, %c0_13] : memref<2x8x32xf32, #tpu.memory_space<vmem>>, vector<2x8x32xf32>
    %19 = vector.shape_cast %16 : vector<2x8xf32> to vector<2x8x1xf32>
    %20 = vector.broadcast %19 : vector<2x8x1xf32> to vector<2x8x32xf32>
    %21 = arith.mulf %20, %18 : vector<2x8x32xf32>
    %cst_14 = arith.constant dense<0.000000e+00> : vector<2x32xf32>
    %22 = vector.multi_reduction <add>, %21, %cst_14 [1] : vector<2x8x32xf32> to vector<2x32xf32>
    %23 = arith.addf %17, %22 : vector<2x32xf32>
    %c0_15 = arith.constant 0 : index
    %c0_16 = arith.constant 0 : index
    %24 = vector.load %arg3[%c0_15, %c0_16] : memref<2x32xf32, #tpu.memory_space<vmem>>, vector<2x32xf32>
    tpu.vector_store %arg3[%c0_15, %c0_16], %23 {strides = array<i32>} : memref<2x32xf32, #tpu.memory_space<vmem>>, vector<2x32xf32>,
    return
  }
  func.func @transform_0(%arg0: i32) -> (i32, i32) {
    %c0_i32 = arith.constant 0 : i32
    %c0_i32_0 = arith.constant 0 : i32
    return %arg0, %c0_i32 : i32, i32
  }
  func.func @transform_1(%arg0: i32) -> (i32, i32, i32) {
    %c0_i32 = arith.constant 0 : i32
    %c0_i32_0 = arith.constant 0 : i32
    %c0_i32_1 = arith.constant 0 : i32
    return %arg0, %c0_i32, %c0_i32_0 : i32, i32, i32
  }
  func.func @transform_2(%arg0: i32) -> (i32, i32) {
    %c0_i32 = arith.constant 0 : i32
    %c0_i32_0 = arith.constant 0 : i32
    return %arg0, %c0_i32 : i32, i32
  }
}

</mosaic_0001>

<llo_original>
// kernel: tpu_custom_call.1
$region0: #{tpu_custom_call.1}
  #allocation0 [shape = 'u32[]', space=smem, size = 0x4, offset = 0x4, fixed_abs, tag = 'smem constant byte address 0x4 - core index']
  #allocation1 [shape = 'u32[144,128]{1,0:T(1,128)}', space=vmem, size = 0x12000, scoped, tag = 'internal scratch']
  #allocation2 [shape = 'f32[2,8]{1,0:T(2,128)}', space=vmem, size = 0x400, scoped, tag = 'scratch operand']
  %s0 = inlined_call_operand.hbm [shape: f32[2,32], index: 0, kind: input, shape index: {}]
  %s1 = inlined_call_operand.hbm [shape: f32[2,8,32], index: 1, kind: input, shape index: {}]
  %s2 = inlined_call_operand.hbm [shape: f32[2,32], index: 2, kind: output, shape index: {}]
  %s3 = sld [smem:[#allocation0]]
  $region26: #{tpu_custom_call.1} parent=0
    _
  %s5 = ssub.s32 1, %s3
  %s6 = scalar_select 0, %s5, %s3
  $region1: #{tpu_custom_call.1} parent=0
    #allocation3 [shape = 'u8[1024]{0}', space=vmem, size = 0x400, scoped, tag = 'input window, operand 0, single buffered']
    #allocation4 [shape = 's32[1]{0}', space=sflag, size = 0x4, scoped, tag = 'scoped memory for tpu_custom_call.1']
    #allocation5 [shape = 's32[1]{0}', space=sflag, size = 0x4, scoped, tag = 'scoped memory for tpu_custom_call.1']
    #allocation6 [shape = 'u8[8192]{0}', space=vmem, size = 0x2000, scoped, tag = 'input window, operand 1, single buffered']
    #allocation7 [shape = 's32[1]{0}', space=sflag, size = 0x4, scoped, tag = 'scoped memory for tpu_custom_call.1']
    #allocation8 [shape = 'u8[1024]{0}', space=vmem, size = 0x400, scoped, tag = 'output window, operand 0, single buffered']
    %7 = vsyncpa [#allocation4], 0
    %8 = vsyncpa [#allocation7], 0
    %9 = vsyncpa [#allocation5], 0
    // Predicated region
    $region2: #{tpu_custom_call.1} parent=1 // pred_check
      _
    $region3: #{tpu_custom_call.1} parent=1 // pred_check_branch
      %11 = sbr.rel (0) target = $region5
    $region4: #{tpu_custom_call.1} parent=1 // pred_region
      %s13 = ssub.s32 32, 32
      %14 = vsyncadd [#allocation4], %s13
      %s16 = sshll.u32 [#allocation3], 4
      %s17 = int_to_ptr.vmem [resolvable:$true] %s16
      %19 = dma.hbm_to_vmem [thread:$0]  %s0, 32, %s17, [#allocation4]
    $region5: #{tpu_custom_call.1} parent=1 // pred_fallthru
      _
    // Predicated region
    $region6: #{tpu_custom_call.1} parent=1 // pred_check
      _
    $region7: #{tpu_custom_call.1} parent=1 // pred_check_branch
      %21 = sbr.rel (0) target = $region9
    $region8: #{tpu_custom_call.1} parent=1 // pred_region
      %s23 = ssub.s32 256, 256
      %24 = vsyncadd [#allocation7], %s23
      %s25 = sshll.u32 [#allocation6], 4
      %s26 = int_to_ptr.vmem [resolvable:$true] %s25
      %31 = dma.hbm_to_vmem [thread:$0]  %s1, 256, %s26, [#allocation7], 128, 128, 8
    $region9: #{tpu_custom_call.1} parent=1 // pred_fallthru
      _
    // Predicated region
    $region10: #{tpu_custom_call.1} parent=1 // pred_check
      _
    $region11: #{tpu_custom_call.1} parent=1 // pred_check_branch
      %33 = sbr.rel (0) target = $region13
    $region12: #{tpu_custom_call.1} parent=1 // pred_region
      %34 = dma.done [#allocation4], 32
    $region13: #{tpu_custom_call.1} parent=1 // pred_fallthru
      _
    // Predicated region
    $region14: #{tpu_custom_call.1} parent=1 // pred_check
      _
    $region15: #{tpu_custom_call.1} parent=1 // pred_check_branch
      %36 = sbr.rel (0) target = $region17
    $region16: #{tpu_custom_call.1} parent=1 // pred_region
      %37 = dma.done [#allocation7], 256
    $region17: #{tpu_custom_call.1} parent=1 // pred_fallthru
      _
    %v38 = vld [vmem:[#allocation3] sm:$0x3]
    %v39 = vld [vmem:[#allocation6] sm:$0xff]
    %v40 = vld [vmem:[#allocation6 + $0x8] sm:$0xff]
    %v43 = vunpack.c.l.s4 1966171168
    %v44 = vunpack.c.0.s8 %v43
    %v45 = vlaneseq
    %v46 = vshrl.u32 %v45, 7
    %v47 = vsub.s32 %v44, %v46
    %v48 = vrot.slane %v38, %v47
    %v49 = vcombine.high %v48, %v48
    %v51 = vunpack.c.l.s4 1966171168
    %v52 = vunpack.c.0.s8 %v51
    %v53 = vlaneseq
    %v54 = vshrl.u32 %v53, 7
    %v55 = vsub.s32 %v52, %v54
    %v56 = vrot.slane %v48, %v55
    %v58 = vunpack.c.l.s4 1966171168
    %v59 = vunpack.c.0.s8 %v58
    %v60 = vlaneseq
    %v61 = vshrl.u32 %v60, 7
    %v62 = vsub.s32 %v59, %v61
    %v63 = vrot.slane %v49, %v62
    %v64 = vlaneseq
    %v65 = vshrl.u32 %v64, 7
    %v66 = vsub.s32 0, %v65
    %v67 = vrot.slane %v56, %v66
    %v68 = vlaneseq
    %v69 = vshrl.u32 %v68, 7
    %v70 = vsub.s32 0, %v69
    %v71 = vrot.slane %v63, %v70
    %v74 = vmul.f32 %v39, %v67
    %v75 = vmul.f32 %v40, %v71
    %vm76 = vcmask 261120
    %v77 = vsel %vm76, %v74, 0.0
    %78 = vadd.xlane.f32.xlu0 %v77
    %v79 = vpop.xlane.xlu0 %78
    %v80 = vsel %vm76, %v75, 0.0
    %81 = vadd.xlane.f32.xlu0 %v80
    %v82 = vpop.xlane.xlu0 %81
    %v85 = vlaneseq
    %v86 = vand.u32 %v85, 127
    %v87 = vlaneseq
    %v88 = vshrl.u32 %v87, 7
    %v89 = vsub.s32 %v86, %v88
    %v90 = vrot.slane %v79, %v89
    %v91 = vlaneseq
    %v92 = vshrl.u32 %v91, 7
    %v93 = vsub.s32 %v86, %v92
    %v94 = vrot.slane %v82, %v93
    %vm95 = vcmask 1041409
    %v96 = vsel %vm95, %v94, %v90
    %vm98 = vcmask 58368
    %99 = vst.msk [vmem:[#allocation2] sm:$0x3] %vm98, %v96
    %v100 = vld [vmem:[#allocation2] sm:$0x3]
    %v101 = vsel %vm98, %v100, -inf
    %102 = vmax.xlane.f32.xlu0 %v101
    %v103 = vpop.xlane.xlu0 %102
    %v104 = vsub.f32 %v100, %v103
    %v105 = vmul.f32 %v104, 1.442695
    %v106 = vpow.pop %v105
    %v107 = vsel %vm98, %v106, 0.0
    %108 = vadd.xlane.f32.xlu0 %v107
    %v109 = vpop.xlane.xlu0 %108
    %v110 = vrcp.pop %v109
    %v111 = vmul.f32 %v106, %v110
    %v112 = vld [vmem:[#allocation6] sm:$0xff]
    %v113 = vld [vmem:[#allocation6 + $0x8] sm:$0xff]
    %v114 = vlaneseq
    %v115 = vshrl.u32 %v114, 7
    %v116 = vsub.s32 0, %v115
    %v117 = vrot.slane %v111, %v116
    %119 = vbcast.lane.b32.xlu0 %v117, 256
    %v120 = vpop.permute.xlu0 %119
    %v121 = vlaneseq
    %v122 = vshrl.u32 %v121, 7
    %v123 = vsub.s32 1, %v122
    %v124 = vrot.slane %v111, %v123
    %126 = vbcast.lane.b32.xlu0 %v124, 256
    %v127 = vpop.permute.xlu0 %126
    %v128 = vmul.f32 %v120, %v112
    %v129 = vmul.f32 %v127, %v113
    %v130 = vsel %vm76, %v128, 0.0
    %v131 = vrot.slane %v130, 4
    %v132 = vadd.f32 %v130, %v131
    %v133 = vrot.slane %v132, 2
    %v134 = vadd.f32 %v132, %v133
    %v135 = vrot.slane %v134, 1
    %v136 = vadd.f32 %v134, %v135
    %v137 = vsel %vm76, %v129, 0.0
    %v138 = vrot.slane %v137, 4
    %v139 = vadd.f32 %v137, %v138
    %v140 = vrot.slane %v139, 2
    %v141 = vadd.f32 %v139, %v140
    %v142 = vrot.slane %v141, 1
    %v143 = vadd.f32 %v141, %v142
    %v144 = vadd.f32 %v136, 0.0
    %v145 = vadd.f32 %v143, 0.0
    %v148 = vsel %vm95, %v145, %v144
    %vm150 = vcmask 254976
    %151 = vst.msk [vmem:[#allocation8] sm:$0x3] %vm150, %v148
    // Predicated region
    $region18: #{tpu_custom_call.1} parent=1 // pred_check
      _
    $region19: #{tpu_custom_call.1} parent=1 // pred_check_branch
      %153 = sbr.rel (0) target = $region21
    $region20: #{tpu_custom_call.1} parent=1 // pred_region
      %s155 = ssub.s32 32, 32
      %156 = vsyncadd [#allocation5], %s155
      %s158 = sshll.u32 [#allocation8], 4
      %s159 = int_to_ptr.vmem [resolvable:$true] %s158
      %161 = dma.vmem_to_hbm [thread:$0]  %s159, 32, %s2, [#allocation5]
    $region21: #{tpu_custom_call.1} parent=1 // pred_fallthru
      _
    // Predicated region
    $region22: #{tpu_custom_call.1} parent=1 // pred_check
      _
    $region23: #{tpu_custom_call.1} parent=1 // pred_check_branch
      %163 = sbr.rel (0) target = $region25
    $region24: #{tpu_custom_call.1} parent=1 // pred_region
      %164 = dma.done [#allocation5], 32
    $region25: #{tpu_custom_call.1} parent=1 // pred_fallthru
      _
    %165 = vsyncpa [#allocation4], 1
    %166 = vsyncpa [#allocation7], 1
    %167 = vsyncpa [#allocation5], 1

</llo_original>
